<compile_context>
chip_gen: v6e
topology: v6e:2x2x1
jax: 0.10.0
libtpu: 0.0.40
codegen_flags: <defaults>
</compile_context>

<pallas_src>
import functools

import jax
import jax.numpy as jnp
from jax.experimental import pallas as pl
from jax.experimental.pallas import tpu as pltpu

_LANE = 128
_SUBLANE = 8


def _round_up(x, m):
    return ((x + m - 1) // m) * m


def _apply_activation(h, activation_fn):
    if activation_fn == "relu":
        return jnp.maximum(h, 0.0)
    elif activation_fn == "leaky_relu":
        return jnp.where(h >= 0.0, h, 0.01 * h)
    elif activation_fn == "sigmoid":
        return jax.nn.sigmoid(h)
    raise ValueError(f"unknown activation {activation_fn}")


def _mlp_kernel(x_ref, w1_ref, b1_ref, w2_ref, b2_ref, w3_ref, b3_ref,
                out_ref, a1_ref, a2_ref, *, activation_fn):
    # Layer 1: (TILE_B, K) @ (K, 256) + (1, 256), f32 accumulate on the MXU.
    # x is cast to the matmul operand dtype in-kernel (VPU pack, hidden by DMA)
    # so the wrapper never has to materialize a converted/padded copy in HBM.
    x = x_ref[...].astype(w1_ref.dtype)
    h1 = jnp.dot(x, w1_ref[...], preferred_element_type=jnp.float32) + b1_ref[...]
    h1 = _apply_activation(h1, activation_fn)
    a1_ref[...] = h1.astype(a1_ref.dtype)

    # Layer 2: (TILE_B, 256) @ (256, 128) + (1, 128)
    h2 = jnp.dot(h1.astype(w2_ref.dtype), w2_ref[...],
                 preferred_element_type=jnp.float32) + b2_ref[...]
    h2 = _apply_activation(h2, activation_fn)
    a2_ref[...] = h2.astype(a2_ref.dtype)

    # Layer 3 (no activation): (TILE_B, 128) @ (128, C_pad) + (1, C_pad)
    out = jnp.dot(h2.astype(w3_ref.dtype), w3_ref[...],
                  preferred_element_type=jnp.float32) + b3_ref[...]
    out_ref[...] = out.astype(out_ref.dtype)


def prepare_params(params, matmul_dtype=jnp.bfloat16):
    """One-time prep (reuse across forward calls):
      * weights transposed to (in, out) layout,
      * num_classes zero-padded to a lane multiple (K stays UNPADDED),
      * biases reshaped to (1, N) and kept in f32,
      * matmul operands default to bf16 (f32 accumulate in-kernel) — halves
        weight/x read bytes and keeps v5e's layer-1 matmul under the DMA shadow.
    """
    w1, b1, w2, b2, w3, b3 = params
    H1, K = w1.shape           # 256, input_size
    H2 = w2.shape[0]           # 128
    C = w3.shape[0]            # num_classes
    C_pad = _round_up(C, _LANE)

    w1t = w1.T.astype(matmul_dtype)                                # (K, 256)
    w2t = w2.T.astype(matmul_dtype)                                # (256, 128)
    w3t = jnp.zeros((H2, C_pad), matmul_dtype).at[:, :C].set(
        w3.T.astype(matmul_dtype))                                 # (128, C_pad)
    b1r = b1.reshape(1, H1).astype(jnp.float32)
    b2r = b2.reshape(1, H2).astype(jnp.float32)
    b3r = jnp.zeros((1, C_pad), jnp.float32).at[:, :C].set(b3.astype(jnp.float32))
    return (w1t, b1r, w2t, b2r, w3t, b3r, C)


def mlp_with_activation(x, prepared, activation_fn="relu", *,
                        tile_b=1024,
                        act_dtype=jnp.bfloat16,
                        out_dtype=jnp.bfloat16,
                        return_padded_logits=False):
    """Forward pass. Returns (logits, [act1, act2]) like the PyTorch module.

    With return_padded_logits=True the logits keep their lane-dense padded
    width (128 columns; the padded columns are exact zeros) so no extra HBM
    slice pass is paid here — slice at the consumer instead.
    """
    w1t, b1r, w2t, b2r, w3t, b3r, num_classes = prepared
    B, K = x.shape
    Kw, H1 = w1t.shape          # (input_size, 256)
    H2, C_pad = w3t.shape       # (128, num_classes padded to 128-multiple)
    assert K == Kw, "input_size mismatch with prepared params"

    # ---- batch tiling: never round B up to a TILE_B multiple ------------
    # grid = cdiv(B, TILE_B); Pallas masks the ragged last block's writes.
    # Grid length is made even when > 1 so v7x's two TensorCores get equal work.
    n_tiles = max(1, pl.cdiv(B, tile_b))
    if n_tiles > 1 and n_tiles % 2 == 1:
        n_tiles += 1
    TILE_B = _round_up(pl.cdiv(B, n_tiles), _SUBLANE)
    if TILE_B >= B:
        TILE_B = B              # single block covering the whole batch (legal:
        grid = (1,)             # block dims equal the full array dims)
    else:
        grid = (pl.cdiv(B, TILE_B),)

    kernel = functools.partial(_mlp_kernel, activation_fn=activation_fn)

    # Weights/biases have constant index_maps -> resident in VMEM, DMA'd once.
    # Single-buffer them so the pipeline allocator spends VMEM on x/out/a1/a2.
    resident = dict(pipeline_mode=pl.Buffered(1))

    flops = 2 * B * (K * H1 + H1 * H2 + H2 * C_pad)
    transcendentals = B * (H1 + H2) if activation_fn == "sigmoid" else 0
    bytes_accessed = (
        x.size * x.dtype.itemsize
        + sum(a.size * a.dtype.itemsize for a in (w1t, b1r, w2t, b2r, w3t, b3r))
        + B * C_pad * jnp.dtype(out_dtype).itemsize
        + B * (H1 + H2) * jnp.dtype(act_dtype).itemsize)

    out, act1, act2 = pl.pallas_call(
        kernel,
        grid=grid,
        out_shape=(
            jax.ShapeDtypeStruct((B, C_pad), out_dtype),   # logits (lane-padded)
            jax.ShapeDtypeStruct((B, H1), act_dtype),      # act1
            jax.ShapeDtypeStruct((B, H2), act_dtype),      # act2
        ),
        in_specs=[
            pl.BlockSpec((TILE_B, K), lambda i: (i, 0)),              # x tile
            pl.BlockSpec((K, H1), lambda i: (0, 0), **resident),      # w1
            pl.BlockSpec((1, H1), lambda i: (0, 0), **resident),      # b1
            pl.BlockSpec((H1, H2), lambda i: (0, 0), **resident),     # w2
            pl.BlockSpec((1, H2), lambda i: (0, 0), **resident),      # b2
            pl.BlockSpec((H2, C_pad), lambda i: (0, 0), **resident),  # w3
            pl.BlockSpec((1, C_pad), lambda i: (0, 0), **resident),   # b3
        ],
        out_specs=(
            pl.BlockSpec((TILE_B, C_pad), lambda i: (i, 0)),
            pl.BlockSpec((TILE_B, H1), lambda i: (i, 0)),
            pl.BlockSpec((TILE_B, H2), lambda i: (i, 0)),
        ),
        compiler_params=pltpu.CompilerParams(
            dimension_semantics=("parallel",),   # megacore: shard batch tiles
            vmem_limit_bytes=32 * 1024 * 1024,
        ),
        cost_estimate=pl.CostEstimate(
            flops=flops,
            transcendentals=transcendentals,
            bytes_accessed=bytes_accessed),
    )(x, w1t, b1r, w2t, b2r, w3t, b3r)

    if return_padded_logits:
        logits = out                      # (B, C_pad); cols >= num_classes are 0
    else:
        logits = out[:, :num_classes]     # module-faithful shape (extra HBM pass)
    return logits, [act1, act2]


def init_params(key, input_size, num_classes, small_weights=True):
    """Deterministic init matching _initialize_small_weights (std=0.01, bias=0)."""
    k1, k2, k3 = jax.random.split(key, 3)
    std = 0.01 if small_weights else 0.1
    w1 = std * jax.random.normal(k1, (256, input_size), jnp.float32)
    b1 = jnp.zeros((256,), jnp.float32)
    w2 = std * jax.random.normal(k2, (128, 256), jnp.float32)
    b2 = jnp.zeros((128,), jnp.float32)
    w3 = std * jax.random.normal(k3, (num_classes, 128), jnp.float32)
    b3 = jnp.zeros((num_classes,), jnp.float32)
    return (w1, b1, w2, b2, w3, b3)


def _reference(x, params, activation_fn):
    w1, b1, w2, b2, w3, b3 = params

    def act(h):
        if activation_fn == "relu":
            return jnp.maximum(h, 0.0)
        if activation_fn == "leaky_relu":
            return jnp.where(h >= 0.0, h, 0.01 * h)
        return jax.nn.sigmoid(h)

    h1 = act(x @ w1.T + b1)
    h2 = act(h1 @ w2.T + b2)
    return h2 @ w3.T + b3, h1, h2


if __name__ == "__main__":
    input_size = 32
    num_classes = 10
    batch = 8

    key = jax.random.PRNGKey(0)
    kx, kp = jax.random.split(key)
    x = jax.random.normal(kx, (batch, input_size), jnp.float32)
    params = init_params(kp, input_size, num_classes, small_weights=True)

    # Exact path (f32 operands + f32 outputs) -> tight tolerance vs reference.
    prep_f32 = prepare_params(params, matmul_dtype=jnp.float32)
    # Recommended fast path (bf16 operands / bf16 stores) -> relaxed tolerance.
    prep_bf16 = prepare_params(params)

    ok = True
    for act_fn in ("relu", "leaky_relu", "sigmoid"):
        ref_out, ref_h1, ref_h2 = _reference(x, params, act_fn)

        logits, acts = mlp_with_activation(
            x, prep_f32, act_fn, act_dtype=jnp.float32, out_dtype=jnp.float32)
        jax.block_until_ready((logits, acts))
        ok &= bool(jnp.allclose(logits, ref_out, atol=1e-5, rtol=1e-5))
        ok &= bool(jnp.allclose(acts[0], ref_h1, atol=1e-5, rtol=1e-5))
        ok &= bool(jnp.allclose(acts[1], ref_h2, atol=1e-5, rtol=1e-5))

        logits_b, acts_b = mlp_with_activation(x, prep_bf16, act_fn)
        jax.block_until_ready((logits_b, acts_b))
        ok &= bool(jnp.allclose(logits_b.astype(jnp.float32), ref_out,
                                atol=1e-2, rtol=1e-2))
        ok &= bool(jnp.allclose(acts_b[0].astype(jnp.float32), ref_h1,
                                atol=1e-2, rtol=1e-2))
        ok &= bool(jnp.allclose(acts_b[1].astype(jnp.float32), ref_h2,
                                atol=1e-2, rtol=1e-2))

    # Ragged multi-tile batch: exercises the even 2-tile grid and the masked
    # ragged last block (no batch padding materialized anywhere).
    big_B = 1032
    xb = jax.random.normal(jax.random.PRNGKey(1), (big_B, input_size), jnp.float32)
    ref_out_b, ref_h1_b, ref_h2_b = _reference(xb, params, "relu")
    logits_big, acts_big = mlp_with_activation(
        xb, prep_f32, "relu", tile_b=1024,
        act_dtype=jnp.float32, out_dtype=jnp.float32)
    jax.block_until_ready((logits_big, acts_big))
    ok &= bool(jnp.allclose(logits_big, ref_out_b, atol=1e-5, rtol=1e-5))
    ok &= bool(jnp.allclose(acts_big[0], ref_h1_b, atol=1e-5, rtol=1e-5))
    ok &= bool(jnp.allclose(acts_big[1], ref_h2_b, atol=1e-5, rtol=1e-5))

    assert ok, "mismatch vs pure-JAX reference"
    print("KERNEL_OK")
</pallas_src>

<mosaic_0001>
module attributes {stable_mosaic.version = 11 : i64} {
  func.func @_mlp_kernel(%arg0: i32, %arg1: memref<8x32xf32, #tpu.memory_space<vmem>>, %arg2: memref<32x256xf32, #tpu.memory_space<vmem>>, %arg3: memref<1x256xf32, #tpu.memory_space<vmem>>, %arg4: memref<256x128xf32, #tpu.memory_space<vmem>>, %arg5: memref<1x128xf32, #tpu.memory_space<vmem>>, %arg6: memref<128x128xf32, #tpu.memory_space<vmem>>, %arg7: memref<1x128xf32, #tpu.memory_space<vmem>>, %arg8: memref<8x128xf32, #tpu.memory_space<vmem>>, %arg9: memref<8x256xf32, #tpu.memory_space<vmem>>, %arg10: memref<8x128xf32, #tpu.memory_space<vmem>>) attributes {dimension_semantics = [#tpu.dimension_semantics<parallel>], iteration_bounds = array<i64: 1>, scalar_prefetch = 0 : i64, scratch_operands = 0 : i64, tpu.core_type = #tpu.core_type<tc>, window_params = [{transform_indices = @transform_0, window_bounds = array<i64: 8, 32>}, {pipeline_mode = #tpu.pipeline_mode<synchronous>, transform_indices = @transform_1, window_bounds = array<i64: 32, 256>}, {pipeline_mode = #tpu.pipeline_mode<synchronous>, transform_indices = @transform_2, window_bounds = array<i64: 1, 256>}, {pipeline_mode = #tpu.pipeline_mode<synchronous>, transform_indices = @transform_3, window_bounds = array<i64: 256, 128>}, {pipeline_mode = #tpu.pipeline_mode<synchronous>, transform_indices = @transform_4, window_bounds = array<i64: 1, 128>}, {pipeline_mode = #tpu.pipeline_mode<synchronous>, transform_indices = @transform_5, window_bounds = array<i64: 128, 128>}, {pipeline_mode = #tpu.pipeline_mode<synchronous>, transform_indices = @transform_6, window_bounds = array<i64: 1, 128>}, {transform_indices = @transform_7, window_bounds = array<i64: 8, 128>}, {transform_indices = @transform_8, window_bounds = array<i64: 8, 256>}, {transform_indices = @transform_9, window_bounds = array<i64: 8, 128>}]} {
    %c0 = arith.constant 0 : index
    %c0_0 = arith.constant 0 : index
    %0 = vector.load %arg1[%c0, %c0_0] : memref<8x32xf32, #tpu.memory_space<vmem>>, vector<8x32xf32>
    %c0_1 = arith.constant 0 : index
    %c0_2 = arith.constant 0 : index
    %1 = vector.load %arg2[%c0_1, %c0_2] : memref<32x256xf32, #tpu.memory_space<vmem>>, vector<32x256xf32>
    %cst = arith.constant dense<0.000000e+00> : vector<8x256xf32>
    %2 = tpu.matmul %0, %1, %cst {dimension_numbers = #tpu.dot_dimension_numbers<[1], [0], [0], [1], [0, 0, 1, 1], [], []>} : vector<8x32xf32>, vector<32x256xf32>, vector<8x256xf32> -> vector<8x256xf32>
    %c0_3 = arith.constant 0 : index
    %c0_4 = arith.constant 0 : index
    %3 = vector.load %arg3[%c0_3, %c0_4] : memref<1x256xf32, #tpu.memory_space<vmem>>, vector<1x256xf32>
    %4 = vector.broadcast %3 : vector<1x256xf32> to vector<8x256xf32>
    %5 = arith.addf %2, %4 : vector<8x256xf32>
    %cst_5 = arith.constant 0.000000e+00 : f32
    %6 = vector.broadcast %cst_5 : f32 to vector<8x256xf32>
    %7 = arith.maximumf %5, %6 : vector<8x256xf32>
    %c0_6 = arith.constant 0 : index
    %c0_7 = arith.constant 0 : index
    %8 = vector.load %arg9[%c0_6, %c0_7] : memref<8x256xf32, #tpu.memory_space<vmem>>, vector<8x256xf32>
    tpu.vector_store %arg9[%c0_6, %c0_7], %7 {strides = array<i32>} : memref<8x256xf32, #tpu.memory_space<vmem>>, vector<8x256xf32>,
    %c0_8 = arith.constant 0 : index
    %c0_9 = arith.constant 0 : index
    %9 = vector.load %arg4[%c0_8, %c0_9] : memref<256x128xf32, #tpu.memory_space<vmem>>, vector<256x128xf32>
    %cst_10 = arith.constant dense<0.000000e+00> : vector<8x128xf32>
    %10 = tpu.matmul %7, %9, %cst_10 {dimension_numbers = #tpu.dot_dimension_numbers<[1], [0], [0], [1], [0, 0, 1, 1], [], []>} : vector<8x256xf32>, vector<256x128xf32>, vector<8x128xf32> -> vector<8x128xf32>
    %c0_11 = arith.constant 0 : index
    %c0_12 = arith.constant 0 : index
    %11 = vector.load %arg5[%c0_11, %c0_12] : memref<1x128xf32, #tpu.memory_space<vmem>>, vector<1x128xf32>
    %12 = vector.broadcast %11 : vector<1x128xf32> to vector<8x128xf32>
    %13 = arith.addf %10, %12 : vector<8x128xf32>
    %cst_13 = arith.constant 0.000000e+00 : f32
    %14 = vector.broadcast %cst_13 : f32 to vector<8x128xf32>
    %15 = arith.maximumf %13, %14 : vector<8x128xf32>
    %c0_14 = arith.constant 0 : index
    %c0_15 = arith.constant 0 : index
    %16 = vector.load %arg10[%c0_14, %c0_15] : memref<8x128xf32, #tpu.memory_space<vmem>>, vector<8x128xf32>
    tpu.vector_store %arg10[%c0_14, %c0_15], %15 {strides = array<i32>} : memref<8x128xf32, #tpu.memory_space<vmem>>, vector<8x128xf32>,
    %c0_16 = arith.constant 0 : index
    %c0_17 = arith.constant 0 : index
    %17 = vector.load %arg6[%c0_16, %c0_17] : memref<128x128xf32, #tpu.memory_space<vmem>>, vector<128x128xf32>
    %cst_18 = arith.constant dense<0.000000e+00> : vector<8x128xf32>
    %18 = tpu.matmul %15, %17, %cst_18 {dimension_numbers = #tpu.dot_dimension_numbers<[1], [0], [0], [1], [0, 0, 1, 1], [], []>} : vector<8x128xf32>, vector<128x128xf32>, vector<8x128xf32> -> vector<8x128xf32>
    %c0_19 = arith.constant 0 : index
    %c0_20 = arith.constant 0 : index
    %19 = vector.load %arg7[%c0_19, %c0_20] : memref<1x128xf32, #tpu.memory_space<vmem>>, vector<1x128xf32>
    %20 = vector.broadcast %19 : vector<1x128xf32> to vector<8x128xf32>
    %21 = arith.addf %18, %20 : vector<8x128xf32>
    %c0_21 = arith.constant 0 : index
    %c0_22 = arith.constant 0 : index
    %22 = vector.load %arg8[%c0_21, %c0_22] : memref<8x128xf32, #tpu.memory_space<vmem>>, vector<8x128xf32>
    tpu.vector_store %arg8[%c0_21, %c0_22], %21 {strides = array<i32>} : memref<8x128xf32, #tpu.memory_space<vmem>>, vector<8x128xf32>,
    return
  }
  func.func @transform_0(%arg0: i32) -> (i32, i32) {
    %c0_i32 = arith.constant 0 : i32
    %c0_i32_0 = arith.constant 0 : i32
    return %arg0, %c0_i32 : i32, i32
  }
  func.func @transform_1(%arg0: i32) -> (i32, i32) {
    %c0_i32 = arith.constant 0 : i32
    %c0_i32_0 = arith.constant 0 : i32
    %c0_i32_1 = arith.constant 0 : i32
    return %c0_i32, %c0_i32_0 : i32, i32
  }
  func.func @transform_2(%arg0: i32) -> (i32, i32) {
    %c0_i32 = arith.constant 0 : i32
    %c0_i32_0 = arith.constant 0 : i32
    %c0_i32_1 = arith.constant 0 : i32
    return %c0_i32, %c0_i32_0 : i32, i32
  }
  func.func @transform_3(%arg0: i32) -> (i32, i32) {
    %c0_i32 = arith.constant 0 : i32
    %c0_i32_0 = arith.constant 0 : i32
    %c0_i32_1 = arith.constant 0 : i32
    return %c0_i32, %c0_i32_0 : i32, i32
  }
  func.func @transform_4(%arg0: i32) -> (i32, i32) {
    %c0_i32 = arith.constant 0 : i32
    %c0_i32_0 = arith.constant 0 : i32
    %c0_i32_1 = arith.constant 0 : i32
    return %c0_i32, %c0_i32_0 : i32, i32
  }
  func.func @transform_5(%arg0: i32) -> (i32, i32) {
    %c0_i32 = arith.constant 0 : i32
    %c0_i32_0 = arith.constant 0 : i32
    %c0_i32_1 = arith.constant 0 : i32
    return %c0_i32, %c0_i32_0 : i32, i32
  }
  func.func @transform_6(%arg0: i32) -> (i32, i32) {
    %c0_i32 = arith.constant 0 : i32
    %c0_i32_0 = arith.constant 0 : i32
    %c0_i32_1 = arith.constant 0 : i32
    return %c0_i32, %c0_i32_0 : i32, i32
  }
  func.func @transform_7(%arg0: i32) -> (i32, i32) {
    %c0_i32 = arith.constant 0 : i32
    %c0_i32_0 = arith.constant 0 : i32
    return %arg0, %c0_i32 : i32, i32
  }
  func.func @transform_8(%arg0: i32) -> (i32, i32) {
    %c0_i32 = arith.constant 0 : i32
    %c0_i32_0 = arith.constant 0 : i32
    return %arg0, %c0_i32 : i32, i32
  }
  func.func @transform_9(%arg0: i32) -> (i32, i32) {
    %c0_i32 = arith.constant 0 : i32
    %c0_i32_0 = arith.constant 0 : i32
    return %arg0, %c0_i32 : i32, i32
  }
}

</mosaic_0001>

<llo_original>
// kernel: tpu_custom_call.1
$region0: #{tpu_custom_call.1}
  #allocation0 [shape = 'u32[]', space=smem, size = 0x4, offset = 0x4, fixed_abs, tag = 'smem constant byte address 0x4 - core index']
  #allocation1 [shape = 'u32[144,128]{1,0:T(1,128)}', space=vmem, size = 0x12000, scoped, tag = 'internal scratch']
  %s0 = inlined_call_operand.hbm [shape: f32[8,32], index: 0, kind: input, shape index: {}]
  %s1 = inlined_call_operand.hbm [shape: f32[32,256], index: 1, kind: input, shape index: {}]
  %s2 = inlined_call_operand.vmem [shape: f32[1,256], index: 2, kind: input, shape index: {}]
  %s3 = inlined_call_operand.hbm [shape: f32[256,128], index: 3, kind: input, shape index: {}]
  %s4 = inlined_call_operand.vmem [shape: f32[1,128], index: 4, kind: input, shape index: {}]
  %s5 = inlined_call_operand.hbm [shape: f32[128,128], index: 5, kind: input, shape index: {}]
  %s6 = inlined_call_operand.vmem [shape: f32[1,128], index: 6, kind: input, shape index: {}]
  %s7 = inlined_call_operand.hbm [shape: f32[8,128], index: 7, kind: output, shape index: {0}]
  %s8 = inlined_call_operand.hbm [shape: f32[8,256], index: 8, kind: output, shape index: {1}]
  %s9 = inlined_call_operand.hbm [shape: f32[8,128], index: 9, kind: output, shape index: {2}]
  %10 = xla_tuple %s7, %s8, %s9
  %s11 = sld [smem:[#allocation0]]
  $region70: #{tpu_custom_call.1} parent=0
    _
  %s13 = ssub.s32 1, %s11
  %s14 = scalar_select 0, %s13, %s11
  $region1: #{tpu_custom_call.1} parent=0
    #allocation2 [shape = 'u8[4096]{0}', space=vmem, size = 0x1000, scoped, tag = 'input window, operand 0, single buffered']
    #allocation3 [shape = 's32[1]{0}', space=sflag, size = 0x4, scoped, tag = 'scoped memory for tpu_custom_call.1']
    #allocation4 [shape = 's32[1]{0}', space=sflag, size = 0x4, scoped, tag = 'scoped memory for tpu_custom_call.1']
    #allocation5 [shape = 'u8[32768]{0}', space=vmem, size = 0x8000, scoped, tag = 'input window, operand 1, single buffered']
    #allocation6 [shape = 's32[1]{0}', space=sflag, size = 0x4, scoped, tag = 'scoped memory for tpu_custom_call.1']
    #allocation7 [shape = 'u8[131072]{0}', space=vmem, size = 0x20000, scoped, tag = 'input window, operand 3, single buffered']
    #allocation8 [shape = 'u8[65536]{0}', space=vmem, size = 0x10000, scoped, tag = 'input window, operand 5, single buffered']
    #allocation9 [shape = 's32[1]{0}', space=sflag, size = 0x4, scoped, tag = 'scoped memory for tpu_custom_call.1']
    #allocation10 [shape = 'u8[4096]{0}', space=vmem, size = 0x1000, scoped, tag = 'output window, operand 0, single buffered']
    #allocation11 [shape = 'u8[8192]{0}', space=vmem, size = 0x2000, scoped, tag = 'output window, operand 1, single buffered']
    #allocation12 [shape = 's32[1]{0}', space=sflag, size = 0x4, scoped, tag = 'scoped memory for tpu_custom_call.1']
    #allocation13 [shape = 'u8[4096]{0}', space=vmem, size = 0x1000, scoped, tag = 'output window, operand 2, single buffered']
    %15 = vsyncpa [#allocation3], 0
    %16 = vsyncpa [#allocation6], 0
    %17 = vsyncpa [#allocation9], 0
    %18 = vsyncpa [#allocation4], 0
    %19 = vsyncpa [#allocation12], 0
    // Predicated region
    $region2: #{tpu_custom_call.1} parent=1 // pred_check
      _
    $region3: #{tpu_custom_call.1} parent=1 // pred_check_branch
      %21 = sbr.rel (0) target = $region5
    $region4: #{tpu_custom_call.1} parent=1 // pred_region
      %s23 = ssub.s32 128, 128
      %24 = vsyncadd [#allocation3], %s23
      %s26 = sshll.u32 [#allocation2], 4
      %s27 = int_to_ptr.vmem [resolvable:$true] %s26
      %29 = dma.hbm_to_vmem [thread:$0]  %s0, 128, %s27, [#allocation3]
    $region5: #{tpu_custom_call.1} parent=1 // pred_fallthru
      _
    // Predicated region
    $region6: #{tpu_custom_call.1} parent=1 // pred_check
      _
    $region7: #{tpu_custom_call.1} parent=1 // pred_check_branch
      %31 = sbr.rel (0) target = $region9
    $region8: #{tpu_custom_call.1} parent=1 // pred_region
      %s33 = ssub.s32 1024, 1024
      %34 = vsyncadd [#allocation6], %s33
      %s35 = sshll.u32 [#allocation5], 4
      %s36 = int_to_ptr.vmem [resolvable:$true] %s35
      %41 = dma.hbm_to_vmem [thread:$0]  %s1, 1024, %s36, [#allocation6], 256, 256, 16
    $region9: #{tpu_custom_call.1} parent=1 // pred_fallthru
      _
    // Predicated region
    $region10: #{tpu_custom_call.1} parent=1 // pred_check
      _
    $region11: #{tpu_custom_call.1} parent=1 // pred_check_branch
      %43 = sbr.rel (0) target = $region13
    $region12: #{tpu_custom_call.1} parent=1 // pred_region
      _
    $region13: #{tpu_custom_call.1} parent=1 // pred_fallthru
      _
    // Predicated region
    $region14: #{tpu_custom_call.1} parent=1 // pred_check
      _
    $region15: #{tpu_custom_call.1} parent=1 // pred_check_branch
      %45 = sbr.rel (0) target = $region17
    $region16: #{tpu_custom_call.1} parent=1 // pred_region
      %s47 = ssub.s32 4096, 4096
      %48 = vsyncadd [#allocation6], %s47
      %s49 = sshll.u32 [#allocation7], 4
      %s50 = int_to_ptr.vmem [resolvable:$true] %s49
      %55 = dma.hbm_to_vmem [thread:$0]  %s3, 4096, %s50, [#allocation6], 128, 128, 8
    $region17: #{tpu_custom_call.1} parent=1 // pred_fallthru
      _
    // Predicated region
    $region18: #{tpu_custom_call.1} parent=1 // pred_check
      _
    $region19: #{tpu_custom_call.1} parent=1 // pred_check_branch
      %57 = sbr.rel (0) target = $region21
    $region20: #{tpu_custom_call.1} parent=1 // pred_region
      _
    $region21: #{tpu_custom_call.1} parent=1 // pred_fallthru
      _
    // Predicated region
    $region22: #{tpu_custom_call.1} parent=1 // pred_check
      _
    $region23: #{tpu_custom_call.1} parent=1 // pred_check_branch
      %59 = sbr.rel (0) target = $region25
    $region24: #{tpu_custom_call.1} parent=1 // pred_region
      %s61 = ssub.s32 2048, 2048
      %62 = vsyncadd [#allocation9], %s61
      %s63 = sshll.u32 [#allocation8], 4
      %s64 = int_to_ptr.vmem [resolvable:$true] %s63
      %69 = dma.hbm_to_vmem [thread:$0]  %s5, 2048, %s64, [#allocation9], 128, 128, 8
    $region25: #{tpu_custom_call.1} parent=1 // pred_fallthru
      _
    // Predicated region
    $region26: #{tpu_custom_call.1} parent=1 // pred_check
      _
    $region27: #{tpu_custom_call.1} parent=1 // pred_check_branch
      %71 = sbr.rel (0) target = $region29
    $region28: #{tpu_custom_call.1} parent=1 // pred_region
      _
    $region29: #{tpu_custom_call.1} parent=1 // pred_fallthru
      _
    // Predicated region
    $region30: #{tpu_custom_call.1} parent=1 // pred_check
      _
    $region31: #{tpu_custom_call.1} parent=1 // pred_check_branch
      %73 = sbr.rel (0) target = $region33
    $region32: #{tpu_custom_call.1} parent=1 // pred_region
      %74 = dma.done [#allocation3], 128
    $region33: #{tpu_custom_call.1} parent=1 // pred_fallthru
      _
    // Predicated region
    $region34: #{tpu_custom_call.1} parent=1 // pred_check
      _
    $region35: #{tpu_custom_call.1} parent=1 // pred_check_branch
      %76 = sbr.rel (0) target = $region37
    $region36: #{tpu_custom_call.1} parent=1 // pred_region
      %77 = dma.done [#allocation6], 1024
    $region37: #{tpu_custom_call.1} parent=1 // pred_fallthru
      _
    // Predicated region
    $region38: #{tpu_custom_call.1} parent=1 // pred_check
      _
    $region39: #{tpu_custom_call.1} parent=1 // pred_check_branch
      %79 = sbr.rel (0) target = $region41
    $region40: #{tpu_custom_call.1} parent=1 // pred_region
      %80 = dma.done [#allocation6], 4096
    $region41: #{tpu_custom_call.1} parent=1 // pred_fallthru
      _
    // Predicated region
    $region42: #{tpu_custom_call.1} parent=1 // pred_check
      _
    $region43: #{tpu_custom_call.1} parent=1 // pred_check_branch
      %82 = sbr.rel (0) target = $region45
    $region44: #{tpu_custom_call.1} parent=1 // pred_region
      %83 = dma.done [#allocation9], 2048
    $region45: #{tpu_custom_call.1} parent=1 // pred_fallthru
      _
    %v84 = vld [vmem:[#allocation2] sm:$0xff]
    %v85 = vld [vmem:[#allocation5] sm:$0xff]
    %v86 = vld [vmem:[#allocation5 + $0x8] sm:$0xff]
    %v87 = vld [vmem:[#allocation5 + $0x10] sm:$0xff]
    %v88 = vld [vmem:[#allocation5 + $0x18] sm:$0xff]
    %v89 = vld [vmem:[#allocation5 + $0x20] sm:$0xff]
    %v90 = vld [vmem:[#allocation5 + $0x28] sm:$0xff]
    %v91 = vld [vmem:[#allocation5 + $0x30] sm:$0xff]
    %v92 = vld [vmem:[#allocation5 + $0x38] sm:$0xff]
    %v93 = vld [vmem:[%s2] sm:$0x3]
    %v95 = vlaneseq
    %v96 = vshrl.u32 %v95, 7
    %v97 = vsub.s32 0, %v96
    %v98 = vrot.slane %v93, %v97
    %v99 = vlaneseq
    %v100 = vshrl.u32 %v99, 7
    %v101 = vsub.s32 1, %v100
    %v102 = vrot.slane %v93, %v101
    %vm105 = vcmask 261120
    %v107 = vsel %vm105, %v84, 0
    %109 = vmatprep.subr.mxu0 0.0
    %110 = vmatpush1.msra.mxu0 0.0
    %111 = vmatprep.subr.mxu0 0.0
    %112 = vmatpush1.msra.mxu0 0.0
    %113 = vmatprep.subr.mxu0 0.0
    %114 = vmatpush1.msra.mxu0 0.0
    %115 = vmatprep.subr.mxu0 0.0
    %116 = vmatpush1.msra.mxu0 0.0
    %117 = vmatprep.subr.mxu0 0.0
    %118 = vmatpush1.msra.mxu0 0.0
    %119 = vmatprep.subr.mxu0 0.0
    %120 = vmatpush1.msra.mxu0 0.0
    %121 = vmatprep.subr.mxu0 0.0
    %122 = vmatpush1.msra.mxu0 0.0
    %123 = vmatprep.subr.mxu0 0.0
    %124 = vmatpush1.msra.mxu0 0.0
    %125 = vmatprep.subr.mxu0 0.0
    %126 = vmatpush1.msra.mxu0 0.0
    %127 = vmatprep.subr.mxu0 0.0
    %128 = vmatpush1.msra.mxu0 0.0
    %129 = vmatprep.subr.mxu0 0.0
    %130 = vmatpush1.msra.mxu0 0.0
    %131 = vmatprep.subr.mxu0 0.0
    %132 = vmatpush1.msra.mxu0 0.0
    %133 = vmatprep.subr.mxu0 %v92
    %134 = vmatpush1.msra.mxu0 %v91
    %135 = vmatprep.subr.mxu0 %v90
    %136 = vmatpush1.msra.mxu0 %v89
    %137 = vmatprep.subr.mxu0 %v88
    %138 = vmatpush1.msra.mxu0 %v87
    %139 = vmatprep.subr.mxu0 %v86
    %140 = vmatpush1.msra.mxu0 %v85
    %141 = vmatprep.subr.mxu0 0.0
    %142 = vmatpush2.msra.mxu0 0.0
    %143 = vmatprep.subr.mxu0 0.0
    %144 = vmatpush2.msra.mxu0 0.0
    %145 = vmatprep.subr.mxu0 0.0
    %146 = vmatpush2.msra.mxu0 0.0
    %147 = vmatprep.subr.mxu0 0.0
    %148 = vmatpush2.msra.mxu0 0.0
    %149 = vmatprep.subr.mxu0 0.0
    %150 = vmatpush2.msra.mxu0 0.0
    %151 = vmatprep.subr.mxu0 0.0
    %152 = vmatpush2.msra.mxu0 0.0
    %153 = vmatprep.subr.mxu0 0.0
    %154 = vmatpush2.msra.mxu0 0.0
    %155 = vmatprep.subr.mxu0 0.0
    %156 = vmatpush2.msra.mxu0 0.0
    %157 = vmatprep.subr.mxu0 0.0
    %158 = vmatpush2.msra.mxu0 0.0
    %159 = vmatprep.subr.mxu0 0.0
    %160 = vmatpush2.msra.mxu0 0.0
    %161 = vmatprep.subr.mxu0 0.0
    %162 = vmatpush2.msra.mxu0 0.0
    %163 = vmatprep.subr.mxu0 0.0
    %164 = vmatpush2.msra.mxu0 0.0
    %165 = vmatprep.subr.mxu0 0.0
    %166 = vmatpush2.msra.mxu0 0.0
    %167 = vmatprep.subr.mxu0 0.0
    %168 = vmatpush2.msra.mxu0 0.0
    %169 = vmatprep.subr.mxu0 0.0
    %170 = vmatpush2.msra.mxu0 0.0
    %171 = vmatprep.subr.mxu0 0.0
    %172 = vmatpush2.msra.mxu0 0.0
    %173 = vmatprep.mubr.f32.mxu0 0.0
    %174 = vmatmul.mubr.f32.gmra.mxu0 %v107
    %v175 = vpop.f32.mrf.mxu0
    %v176 = vadd.f32 %v98, %v175
    %v177 = vpop.f32.mrf.mxu0
    %v178 = vadd.f32 %v102, %v177
    %179 = vdwg.mxu0
    %v180 = vmax.f32 %v176, 0.0
    %v181 = vmax.f32 %v178, 0.0
    %182 = vst [vmem:[#allocation11] sm:$0xff] %v180
    %183 = vst [vmem:[#allocation11 + $0x8] sm:$0xff] %v181
    %v184 = vld [vmem:[#allocation7] sm:$0xff]
    %v185 = vld [vmem:[#allocation7 + $0x8] sm:$0xff]
    %v186 = vld [vmem:[#allocation7 + $0x10] sm:$0xff]
    %v187 = vld [vmem:[#allocation7 + $0x18] sm:$0xff]
    %v188 = vld [vmem:[#allocation7 + $0x20] sm:$0xff]
    %v189 = vld [vmem:[#allocation7 + $0x28] sm:$0xff]
    %v190 = vld [vmem:[#allocation7 + $0x30] sm:$0xff]
    %v191 = vld [vmem:[#allocation7 + $0x38] sm:$0xff]
    %v192 = vld [vmem:[#allocation7 + $0x40] sm:$0xff]
    %v193 = vld [vmem:[#allocation7 + $0x48] sm:$0xff]
    %v194 = vld [vmem:[#allocation7 + $0x50] sm:$0xff]
    %v195 = vld [vmem:[#allocation7 + $0x58] sm:$0xff]
    %v196 = vld [vmem:[#allocation7 + $0x60] sm:$0xff]
    %v197 = vld [vmem:[#allocation7 + $0x68] sm:$0xff]
    %v198 = vld [vmem:[#allocation7 + $0x70] sm:$0xff]
    %v199 = vld [vmem:[#allocation7 + $0x78] sm:$0xff]
    %v200 = vld [vmem:[#allocation7 + $0x80] sm:$0xff]
    %v201 = vld [vmem:[#allocation7 + $0x88] sm:$0xff]
    %v202 = vld [vmem:[#allocation7 + $0x90] sm:$0xff]
    %v203 = vld [vmem:[#allocation7 + $0x98] sm:$0xff]
    %v204 = vld [vmem:[#allocation7 + $0xa0] sm:$0xff]
    %v205 = vld [vmem:[#allocation7 + $0xa8] sm:$0xff]
    %v206 = vld [vmem:[#allocation7 + $0xb0] sm:$0xff]
    %v207 = vld [vmem:[#allocation7 + $0xb8] sm:$0xff]
    %v208 = vld [vmem:[#allocation7 + $0xc0] sm:$0xff]
    %v209 = vld [vmem:[#allocation7 + $0xc8] sm:$0xff]
    %v210 = vld [vmem:[#allocation7 + $0xd0] sm:$0xff]
    %v211 = vld [vmem:[#allocation7 + $0xd8] sm:$0xff]
    %v212 = vld [vmem:[#allocation7 + $0xe0] sm:$0xff]
    %v213 = vld [vmem:[#allocation7 + $0xe8] sm:$0xff]
    %v214 = vld [vmem:[#allocation7 + $0xf0] sm:$0xff]
    %v215 = vld [vmem:[#allocation7 + $0xf8] sm:$0xff]
    %v216 = vld [vmem:[%s4] sm:$0x1]
    %v218 = vlaneseq
    %v219 = vshrl.u32 %v218, 7
    %v220 = vsub.s32 0, %v219
    %v221 = vrot.slane %v216, %v220
    %223 = vmatprep.subr.mxu0 0.0
    %224 = vmatpush1.msra.mxu0 %v199
    %225 = vmatprep.subr.mxu0 0.0
    %226 = vmatpush1.msra.mxu0 %v198
    %227 = vmatprep.subr.mxu0 0.0
    %228 = vmatpush1.msra.mxu0 %v197
    %229 = vmatprep.subr.mxu0 0.0
    %230 = vmatpush1.msra.mxu0 %v196
    %231 = vmatprep.subr.mxu0 0.0
    %232 = vmatpush1.msra.mxu0 %v195
    %233 = vmatprep.subr.mxu0 0.0
    %234 = vmatpush1.msra.mxu0 %v194
    %235 = vmatprep.subr.mxu0 0.0
    %236 = vmatpush1.msra.mxu0 %v193
    %237 = vmatprep.subr.mxu0 0.0
    %238 = vmatpush1.msra.mxu0 %v192
    %239 = vmatprep.subr.mxu0 0.0
    %240 = vmatpush1.msra.mxu0 %v191
    %241 = vmatprep.subr.mxu0 0.0
    %242 = vmatpush1.msra.mxu0 %v190
    %243 = vmatprep.subr.mxu0 0.0
    %244 = vmatpush1.msra.mxu0 %v189
    %245 = vmatprep.subr.mxu0 0.0
    %246 = vmatpush1.msra.mxu0 %v188
    %247 = vmatprep.subr.mxu0 0.0
    %248 = vmatpush1.msra.mxu0 %v187
    %249 = vmatprep.subr.mxu0 0.0
    %250 = vmatpush1.msra.mxu0 %v186
    %251 = vmatprep.subr.mxu0 0.0
    %252 = vmatpush1.msra.mxu0 %v185
    %253 = vmatprep.subr.mxu0 0.0
    %254 = vmatpush1.msra.mxu0 %v184
    %255 = vmatprep.subr.mxu0 0.0
    %256 = vmatpush2.msra.mxu0 %v215
    %257 = vmatprep.subr.mxu0 0.0
    %258 = vmatpush2.msra.mxu0 %v214
    %259 = vmatprep.subr.mxu0 0.0
    %260 = vmatpush2.msra.mxu0 %v213
    %261 = vmatprep.subr.mxu0 0.0
    %262 = vmatpush2.msra.mxu0 %v212
    %263 = vmatprep.subr.mxu0 0.0
    %264 = vmatpush2.msra.mxu0 %v211
    %265 = vmatprep.subr.mxu0 0.0
    %266 = vmatpush2.msra.mxu0 %v210
    %267 = vmatprep.subr.mxu0 0.0
    %268 = vmatpush2.msra.mxu0 %v209
    %269 = vmatprep.subr.mxu0 0.0
    %270 = vmatpush2.msra.mxu0 %v208
    %271 = vmatprep.subr.mxu0 0.0
    %272 = vmatpush2.msra.mxu0 %v207
    %273 = vmatprep.subr.mxu0 0.0
    %274 = vmatpush2.msra.mxu0 %v206
    %275 = vmatprep.subr.mxu0 0.0
    %276 = vmatpush2.msra.mxu0 %v205
    %277 = vmatprep.subr.mxu0 0.0
    %278 = vmatpush2.msra.mxu0 %v204
    %279 = vmatprep.subr.mxu0 0.0
    %280 = vmatpush2.msra.mxu0 %v203
    %281 = vmatprep.subr.mxu0 0.0
    %282 = vmatpush2.msra.mxu0 %v202
    %283 = vmatprep.subr.mxu0 0.0
    %284 = vmatpush2.msra.mxu0 %v201
    %285 = vmatprep.subr.mxu0 0.0
    %286 = vmatpush2.msra.mxu0 %v200
    %287 = vmatprep.mubr.f32.mxu0 %v181
    %288 = vmatmul.mubr.f32.gmra.mxu0 %v180
    %v289 = vpop.f32.mrf.mxu0
    %v290 = vadd.f32 %v221, %v289
    %v291 = vpop.f32.mrf.mxu0
    %292 = vdwg.mxu0
    %v293 = vmax.f32 %v290, 0.0
    %294 = vst [vmem:[#allocation13] sm:$0xff] %v293
    %v295 = vld [vmem:[#allocation8] sm:$0xff]
    %v296 = vld [vmem:[#allocation8 + $0x8] sm:$0xff]
    %v297 = vld [vmem:[#allocation8 + $0x10] sm:$0xff]
    %v298 = vld [vmem:[#allocation8 + $0x18] sm:$0xff]
    %v299 = vld [vmem:[#allocation8 + $0x20] sm:$0xff]
    %v300 = vld [vmem:[#allocation8 + $0x28] sm:$0xff]
    %v301 = vld [vmem:[#allocation8 + $0x30] sm:$0xff]
    %v302 = vld [vmem:[#allocation8 + $0x38] sm:$0xff]
    %v303 = vld [vmem:[#allocation8 + $0x40] sm:$0xff]
    %v304 = vld [vmem:[#allocation8 + $0x48] sm:$0xff]
    %v305 = vld [vmem:[#allocation8 + $0x50] sm:$0xff]
    %v306 = vld [vmem:[#allocation8 + $0x58] sm:$0xff]
    %v307 = vld [vmem:[#allocation8 + $0x60] sm:$0xff]
    %v308 = vld [vmem:[#allocation8 + $0x68] sm:$0xff]
    %v309 = vld [vmem:[#allocation8 + $0x70] sm:$0xff]
    %v310 = vld [vmem:[#allocation8 + $0x78] sm:$0xff]
    %v311 = vld [vmem:[%s6] sm:$0x1]
    %v313 = vlaneseq
    %v314 = vshrl.u32 %v313, 7
    %v315 = vsub.s32 0, %v314
    %v316 = vrot.slane %v311, %v315
    %318 = vmatprep.subr.mxu0 0.0
    %319 = vmatpush1.msra.mxu0 %v310
    %320 = vmatprep.subr.mxu0 0.0
    %321 = vmatpush1.msra.mxu0 %v309
    %322 = vmatprep.subr.mxu0 0.0
    %323 = vmatpush1.msra.mxu0 %v308
    %324 = vmatprep.subr.mxu0 0.0
    %325 = vmatpush1.msra.mxu0 %v307
    %326 = vmatprep.subr.mxu0 0.0
    %327 = vmatpush1.msra.mxu0 %v306
    %328 = vmatprep.subr.mxu0 0.0
    %329 = vmatpush1.msra.mxu0 %v305
    %330 = vmatprep.subr.mxu0 0.0
    %331 = vmatpush1.msra.mxu0 %v304
    %332 = vmatprep.subr.mxu0 0.0
    %333 = vmatpush1.msra.mxu0 %v303
    %334 = vmatprep.subr.mxu0 0.0
    %335 = vmatpush1.msra.mxu0 %v302
    %336 = vmatprep.subr.mxu0 0.0
    %337 = vmatpush1.msra.mxu0 %v301
    %338 = vmatprep.subr.mxu0 0.0
    %339 = vmatpush1.msra.mxu0 %v300
    %340 = vmatprep.subr.mxu0 0.0
    %341 = vmatpush1.msra.mxu0 %v299
    %342 = vmatprep.subr.mxu0 0.0
    %343 = vmatpush1.msra.mxu0 %v298
    %344 = vmatprep.subr.mxu0 0.0
    %345 = vmatpush1.msra.mxu0 %v297
    %346 = vmatprep.subr.mxu0 0.0
    %347 = vmatpush1.msra.mxu0 %v296
    %348 = vmatprep.subr.mxu0 0.0
    %349 = vmatpush1.msra.mxu0 %v295
    %350 = vmatprep.subr.mxu0 0.0
    %351 = vmatpush2.msra.mxu0 0.0
    %352 = vmatprep.subr.mxu0 0.0
    %353 = vmatpush2.msra.mxu0 0.0
    %354 = vmatprep.subr.mxu0 0.0
    %355 = vmatpush2.msra.mxu0 0.0
    %356 = vmatprep.subr.mxu0 0.0
    %357 = vmatpush2.msra.mxu0 0.0
    %358 = vmatprep.subr.mxu0 0.0
    %359 = vmatpush2.msra.mxu0 0.0
    %360 = vmatprep.subr.mxu0 0.0
    %361 = vmatpush2.msra.mxu0 0.0
    %362 = vmatprep.subr.mxu0 0.0
    %363 = vmatpush2.msra.mxu0 0.0
    %364 = vmatprep.subr.mxu0 0.0
    %365 = vmatpush2.msra.mxu0 0.0
    %366 = vmatprep.subr.mxu0 0.0
    %367 = vmatpush2.msra.mxu0 0.0
    %368 = vmatprep.subr.mxu0 0.0
    %369 = vmatpush2.msra.mxu0 0.0
    %370 = vmatprep.subr.mxu0 0.0
    %371 = vmatpush2.msra.mxu0 0.0
    %372 = vmatprep.subr.mxu0 0.0
    %373 = vmatpush2.msra.mxu0 0.0
    %374 = vmatprep.subr.mxu0 0.0
    %375 = vmatpush2.msra.mxu0 0.0
    %376 = vmatprep.subr.mxu0 0.0
    %377 = vmatpush2.msra.mxu0 0.0
    %378 = vmatprep.subr.mxu0 0.0
    %379 = vmatpush2.msra.mxu0 0.0
    %380 = vmatprep.subr.mxu0 0.0
    %381 = vmatpush2.msra.mxu0 0.0
    %382 = vmatprep.mubr.f32.mxu0 0.0
    %383 = vmatmul.mubr.f32.gmra.mxu0 %v293
    %v384 = vpop.f32.mrf.mxu0
    %v385 = vadd.f32 %v316, %v384
    %v386 = vpop.f32.mrf.mxu0
    %387 = vdwg.mxu0
    %388 = vst [vmem:[#allocation10] sm:$0xff] %v385
    // Predicated region
    $region46: #{tpu_custom_call.1} parent=1 // pred_check
      _
    $region47: #{tpu_custom_call.1} parent=1 // pred_check_branch
      %390 = sbr.rel (0) target = $region49
    $region48: #{tpu_custom_call.1} parent=1 // pred_region
      %s392 = ssub.s32 128, 128
      %393 = vsyncadd [#allocation4], %s392
      %s395 = sshll.u32 [#allocation10], 4
      %s396 = int_to_ptr.vmem [resolvable:$true] %s395
      %398 = dma.vmem_to_hbm [thread:$0]  %s396, 128, %s7, [#allocation4]
    $region49: #{tpu_custom_call.1} parent=1 // pred_fallthru
      _
    // Predicated region
    $region50: #{tpu_custom_call.1} parent=1 // pred_check
      _
    $region51: #{tpu_custom_call.1} parent=1 // pred_check_branch
      %400 = sbr.rel (0) target = $region53
    $region52: #{tpu_custom_call.1} parent=1 // pred_region
      %s402 = ssub.s32 256, 256
      %403 = vsyncadd [#allocation12], %s402
      %s405 = sshll.u32 [#allocation11], 4
      %s406 = int_to_ptr.vmem [resolvable:$true] %s405
      %408 = dma.vmem_to_hbm [thread:$0]  %s406, 256, %s8, [#allocation12]
    $region53: #{tpu_custom_call.1} parent=1 // pred_fallthru
      _
    // Predicated region
    $region54: #{tpu_custom_call.1} parent=1 // pred_check
      _
    $region55: #{tpu_custom_call.1} parent=1 // pred_check_branch
      %410 = sbr.rel (0) target = $region57
    $region56: #{tpu_custom_call.1} parent=1 // pred_region
      %s412 = ssub.s32 128, 128
      %413 = vsyncadd [#allocation12], %s412
      %s415 = sshll.u32 [#allocation13], 4
      %s416 = int_to_ptr.vmem [resolvable:$true] %s415
      %418 = dma.vmem_to_hbm [thread:$0]  %s416, 128, %s9, [#allocation12]
    $region57: #{tpu_custom_call.1} parent=1 // pred_fallthru
      _
    // Predicated region
    $region58: #{tpu_custom_call.1} parent=1 // pred_check
      _
    $region59: #{tpu_custom_call.1} parent=1 // pred_check_branch
      %420 = sbr.rel (0) target = $region61
    $region60: #{tpu_custom_call.1} parent=1 // pred_region
      %421 = dma.done [#allocation4], 128
    $region61: #{tpu_custom_call.1} parent=1 // pred_fallthru
      _
    // Predicated region
    $region62: #{tpu_custom_call.1} parent=1 // pred_check
      _
    $region63: #{tpu_custom_call.1} parent=1 // pred_check_branch
      %423 = sbr.rel (0) target = $region65
    $region64: #{tpu_custom_call.1} parent=1 // pred_region
      %424 = dma.done [#allocation12], 256
    $region65: #{tpu_custom_call.1} parent=1 // pred_fallthru
      _
    // Predicated region
    $region66: #{tpu_custom_call.1} parent=1 // pred_check
      _
    $region67: #{tpu_custom_call.1} parent=1 // pred_check_branch
      %426 = sbr.rel (0) target = $region69
    $region68: #{tpu_custom_call.1} parent=1 // pred_region
      %427 = dma.done [#allocation12], 128
    $region69: #{tpu_custom_call.1} parent=1 // pred_fallthru
      _
    %428 = vsyncpa [#allocation3], 1
    %429 = vsyncpa [#allocation6], 1
    %430 = vsyncpa [#allocation9], 1
    %431 = vsyncpa [#allocation4], 1
    %432 = vsyncpa [#allocation12], 1

</llo_original>
